<compile_context>
chip_gen: v7x
topology: tpu7x:2x2x1
jax: 0.10.0
libtpu: 0.0.40
codegen_flags: <defaults>
</compile_context>

<pallas_src>
import numpy as np
import jax
import jax.numpy as jnp
from jax import lax
from jax.experimental import pallas as pl
from jax.experimental.pallas import tpu as pltpu


def outsigmoid_kernel(cur_ref, halo_ref, wb_ref, o_ref, win_ref):
    # cur_ref : (1, Cin, TH, W+2)   VMEM  - TH padded rows of the input slab
    # halo_ref: (1, Cin, 8,  W+2)   VMEM  - next 8 padded rows (only 2 used)
    # wb_ref  : (9*Cin + 1,)        SMEM  - fused per-tap weights + scalar bias
    # o_ref   : (1, 1, TH, W)       VMEM  - sigmoid output rows
    # win_ref : (Cin, TH+8, W+2)    VMEM scratch - stitched halo window
    cin = cur_ref.shape[1]
    th = cur_ref.shape[2]
    w = cur_ref.shape[3] - 2

    # Stitch the TH-row block with its 8-row bottom halo (sublane-aligned
    # VMEM stores: TH is a multiple of 8).
    win_ref[:, :th, :] = cur_ref[0]
    win_ref[:, th:th + 8, :] = halo_ref[0]

    # 3x3 conv . eval-BN . 1x1 conv collapsed into 9*Cin scalar MACs (VPU).
    acc = jnp.zeros((th, w), jnp.float32)
    k = 0
    for ci in range(cin):
        plane = win_ref[ci]                          # (TH+8, W+2)
        for dy in range(3):
            for dx in range(3):
                acc = acc + wb_ref[k] * plane[dy:dy + th, dx:dx + w]
                k += 1
    bias = wb_ref[9 * cin]
    o_ref[0, 0] = jax.nn.sigmoid(acc + bias)         # EUP sigmoid


def _round_up(a, b):
    return -(-a // b) * b


def _pick_tile_h(h8, wp2, cin, n_batch, vmem_budget=4 << 20):
    """Largest row tile (multiple of 8, divides h8) whose double-buffered
    'cur' stream fits the VMEM budget; prefer even (>=4) total grid steps so
    v7x's two TensorCores split the parallel axes evenly."""
    lanes = _round_up(wp2, 128)                      # VMEM lane padding

    def fits(t):
        return 2 * cin * t * lanes * 4 <= vmem_budget

    cands = [t for t in (512, 256, 128, 64, 32, 16, 8)
             if h8 % t == 0 and fits(t)] or [8]
    for pred in (lambda s: s >= 4 and s % 2 == 0,    # v7x: even and >= 4 steps
                 lambda s: s >= 2 and s % 2 == 0,
                 lambda s: s >= 2):
        for t in cands:                              # cands are descending
            if pred(n_batch * (h8 // t)):
                return t
    return cands[0]


def out_sigmoid_pallas(x_nchw, params):
    """x_nchw: (N, Cin, H, W) float32 -> (N, 1, H, W) float32."""
    w3, gamma, beta, run_mean, run_var, eps, w1, b1 = params
    N, Cin, H, W = x_nchw.shape
    out_c = w3.shape[0]

    # ---- fold conv3x3 -> BN(eval) -> conv1x1 into 9*Cin weights + 1 bias ----
    scale = gamma / jnp.sqrt(run_var + eps)                       # (out_c,)
    shift = beta - run_mean * scale                               # (out_c,)
    w1_vec = w1.reshape(out_c)                                    # (out_c,)
    # w_pp[ci, dy, dx] = sum_oc w3[oc, ci, dy, dx] * scale[oc] * w1[oc]
    w_pp = jnp.einsum('oikl,o->ikl', w3, scale * w1_vec)          # (Cin, 3, 3)
    b_fused = jnp.sum(shift * w1_vec) + b1[0]                     # scalar
    wb = jnp.concatenate([w_pp.reshape(Cin * 9),                  # (ci, dy, dx) order
                          b_fused.reshape(1)])                    # (9*Cin + 1,)

    # ---- pad the slab ONCE (no im2col) and choose the row tile ----
    Wp2 = W + 2
    H8 = _round_up(H, 8)               # output rows computed; extras sliced off
    TH = _pick_tile_h(H8, Wp2, Cin, N)
    Hp2 = H8 + TH                      # padded rows: 1 top, H image, zeros below
    xp = jnp.pad(x_nchw, ((0, 0), (0, 0), (1, Hp2 - H - 1), (1, 1)))

    grid = (N, H8 // TH)
    th_blocks8 = TH // 8               # static: halo block index stride

    out_pad = pl.pallas_call(
        outsigmoid_kernel,
        out_shape=jax.ShapeDtypeStruct((N, 1, H8, W), jnp.float32),
        grid_spec=pltpu.PrefetchScalarGridSpec(
            num_scalar_prefetch=0,
            grid=grid,
            in_specs=[
                # TH padded rows of the slab for this (batch, row-block).
                pl.BlockSpec((1, Cin, TH, Wp2), lambda n, r: (n, 0, r, 0)),
                # Next 8 padded rows of the SAME slab = the 1-row conv halo.
                pl.BlockSpec((1, Cin, 8, Wp2),
                             lambda n, r: (n, 0, (r + 1) * th_blocks8, 0)),
                # Fused weights + bias: tiny, scalar-indexed -> SMEM.
                pl.BlockSpec(memory_space=pltpu.MemorySpace.SMEM),
            ],
            # Output is tiny (~1/(9*Cin) of input bytes), so W-on-lanes partial
            # stores are irrelevant here; real SR sizes (W >= 128) are lane-dense.
            out_specs=pl.BlockSpec((1, 1, TH, W), lambda n, r: (n, 0, r, 0)),
            scratch_shapes=[pltpu.VMEM((Cin, TH + 8, Wp2), jnp.float32)],
        ),
        compiler_params=pltpu.CompilerParams(
            dimension_semantics=("parallel", "parallel")),
    )(xp, xp, wb)

    return out_pad[:, :, :H, :]


def out_sigmoid_reference(x_nchw, params):
    """Pure-JAX reference mirroring the PyTorch module (BN in eval mode)."""
    w3, gamma, beta, run_mean, run_var, eps, w1, b1 = params
    y = lax.conv_general_dilated(
        x_nchw, w3, window_strides=(1, 1), padding=((1, 1), (1, 1)),
        dimension_numbers=("NCHW", "OIHW", "NCHW"))
    scale = gamma / jnp.sqrt(run_var + eps)
    shift = beta - run_mean * scale
    y = y * scale[None, :, None, None] + shift[None, :, None, None]
    z = lax.conv_general_dilated(
        y, w1, window_strides=(1, 1), padding=((0, 0), (0, 0)),
        dimension_numbers=("NCHW", "OIHW", "NCHW"))
    z = z + b1[None, :, None, None]
    return jax.nn.sigmoid(z)


def make_params(inp_planes, out_c, key):
    k1, k2, k3 = jax.random.split(key, 3)
    # Conv2d(inp_planes -> out_c, 3x3, bias=False), torch layout (O, I, kH, kW)
    w3 = jax.random.normal(k1, (out_c, inp_planes, 3, 3), jnp.float32) * 0.1
    # BatchNorm2d(out_c) -- deterministic, eval-mode statistics
    gamma = 1.0 + 0.10 * jnp.arange(out_c, dtype=jnp.float32)
    beta = 0.05 * jnp.arange(out_c, dtype=jnp.float32)
    run_mean = 0.01 * jnp.arange(out_c, dtype=jnp.float32)
    run_var = 1.0 + 0.02 * jnp.arange(out_c, dtype=jnp.float32)
    eps = jnp.float32(1e-5)
    # Conv2d(out_c -> 1, 1x1, bias=True)
    w1 = jax.random.normal(k2, (1, out_c, 1, 1), jnp.float32) * 0.2
    b1 = jax.random.normal(k3, (1,), jnp.float32) * 0.1
    return (w3, gamma, beta, run_mean, run_var, eps, w1, b1)


if __name__ == "__main__":
    key = jax.random.PRNGKey(0)
    kx, kp = jax.random.split(key)

    N, Cin, H, W = 2, 4, 16, 16
    out_c = 8
    x = jax.random.normal(kx, (N, Cin, H, W), jnp.float32)
    params = make_params(Cin, out_c, kp)

    out = jax.block_until_ready(out_sigmoid_pallas(x, params))
    ref = jax.block_until_ready(out_sigmoid_reference(x, params))

    assert out.shape == (N, 1, H, W)
    np.testing.assert_allclose(np.asarray(out), np.asarray(ref), rtol=1e-5, atol=1e-5)

    print("KERNEL_OK")
</pallas_src>

<mosaic_0001>
module attributes {stable_mosaic.version = 11 : i64} {
  func.func @outsigmoid_kernel(%arg0: i32, %arg1: i32, %arg2: memref<1x4x8x18xf32, #tpu.memory_space<vmem>>, %arg3: memref<1x4x8x18xf32, #tpu.memory_space<vmem>>, %arg4: memref<37xf32, #tpu.memory_space<smem>>, %arg5: memref<1x1x8x16xf32, #tpu.memory_space<vmem>>, %arg6: memref<4x16x18xf32, #tpu.memory_space<vmem>>) attributes {dimension_semantics = [#tpu.dimension_semantics<parallel>, #tpu.dimension_semantics<parallel>], iteration_bounds = array<i64: 2, 2>, scalar_prefetch = 0 : i64, scratch_operands = 1 : i64, tpu.core_type = #tpu.core_type<tc>, window_params = [{transform_indices = @transform_0, window_bounds = array<i64: 1, 4, 8, 18>}, {transform_indices = @transform_1, window_bounds = array<i64: 1, 4, 8, 18>}, {transform_indices = @transform_2, window_bounds = array<i64: 37>}, {transform_indices = @transform_3, window_bounds = array<i64: 1, 1, 8, 16>}]} {
    %c0 = arith.constant 0 : index
    %c0_0 = arith.constant 0 : index
    %c0_1 = arith.constant 0 : index
    %c0_2 = arith.constant 0 : index
    %0 = vector.load %arg2[%c0, %c0_0, %c0_1, %c0_2] : memref<1x4x8x18xf32, #tpu.memory_space<vmem>>, vector<1x4x8x18xf32>
    %1 = vector.shape_cast %0 : vector<1x4x8x18xf32> to vector<4x8x18xf32>
    %c0_3 = arith.constant 0 : index
    %c0_4 = arith.constant 0 : index
    %c0_5 = arith.constant 0 : index
    %2 = vector.load %arg6[%c0_3, %c0_4, %c0_5] : memref<4x16x18xf32, #tpu.memory_space<vmem>>, vector<4x8x18xf32>
    tpu.vector_store %arg6[%c0_3, %c0_4, %c0_5], %1 {strides = array<i32>} : memref<4x16x18xf32, #tpu.memory_space<vmem>>, vector<4x8x18xf32>,
    %c0_6 = arith.constant 0 : index
    %c0_7 = arith.constant 0 : index
    %c0_8 = arith.constant 0 : index
    %c0_9 = arith.constant 0 : index
    %3 = vector.load %arg3[%c0_6, %c0_7, %c0_8, %c0_9] : memref<1x4x8x18xf32, #tpu.memory_space<vmem>>, vector<1x4x8x18xf32>
    %4 = vector.shape_cast %3 : vector<1x4x8x18xf32> to vector<4x8x18xf32>
    %c0_10 = arith.constant 0 : index
    %c8 = arith.constant 8 : index
    %c0_11 = arith.constant 0 : index
    %5 = vector.load %arg6[%c0_10, %c8, %c0_11] : memref<4x16x18xf32, #tpu.memory_space<vmem>>, vector<4x8x18xf32>
    tpu.vector_store %arg6[%c0_10, %c8, %c0_11], %4 {strides = array<i32>} : memref<4x16x18xf32, #tpu.memory_space<vmem>>, vector<4x8x18xf32>,
    %cst = arith.constant 0.000000e+00 : f32
    %6 = vector.broadcast %cst : f32 to vector<8x16xf32>
    %c0_12 = arith.constant 0 : index
    %c0_13 = arith.constant 0 : index
    %c0_14 = arith.constant 0 : index
    %7 = vector.load %arg6[%c0_12, %c0_13, %c0_14] : memref<4x16x18xf32, #tpu.memory_space<vmem>>, vector<1x16x18xf32>
    %8 = vector.shape_cast %7 : vector<1x16x18xf32> to vector<16x18xf32>
    %c0_15 = arith.constant 0 : index
    %9 = memref.load %arg4[%c0_15] : memref<37xf32, #tpu.memory_space<smem>>
    %10 = vector.extract_strided_slice %8 {offsets = [0, 0], sizes = [8, 16], strides = [1, 1]} : vector<16x18xf32> to vector<8x16xf32>
    %11 = vector.broadcast %9 : f32 to vector<8x16xf32>
    %12 = arith.mulf %11, %10 : vector<8x16xf32>
    %13 = arith.addf %6, %12 : vector<8x16xf32>
    %c1 = arith.constant 1 : index
    %14 = memref.load %arg4[%c1] : memref<37xf32, #tpu.memory_space<smem>>
    %15 = vector.extract_strided_slice %8 {offsets = [0, 1], sizes = [8, 16], strides = [1, 1]} : vector<16x18xf32> to vector<8x16xf32>
    %16 = vector.broadcast %14 : f32 to vector<8x16xf32>
    %17 = arith.mulf %16, %15 : vector<8x16xf32>
    %18 = arith.addf %13, %17 : vector<8x16xf32>
    %c2 = arith.constant 2 : index
    %19 = memref.load %arg4[%c2] : memref<37xf32, #tpu.memory_space<smem>>
    %20 = vector.extract_strided_slice %8 {offsets = [0, 2], sizes = [8, 16], strides = [1, 1]} : vector<16x18xf32> to vector<8x16xf32>
    %21 = vector.broadcast %19 : f32 to vector<8x16xf32>
    %22 = arith.mulf %21, %20 : vector<8x16xf32>
    %23 = arith.addf %18, %22 : vector<8x16xf32>
    %c3 = arith.constant 3 : index
    %24 = memref.load %arg4[%c3] : memref<37xf32, #tpu.memory_space<smem>>
    %25 = vector.extract_strided_slice %8 {offsets = [1, 0], sizes = [8, 16], strides = [1, 1]} : vector<16x18xf32> to vector<8x16xf32>
    %26 = vector.broadcast %24 : f32 to vector<8x16xf32>
    %27 = arith.mulf %26, %25 : vector<8x16xf32>
    %28 = arith.addf %23, %27 : vector<8x16xf32>
    %c4 = arith.constant 4 : index
    %29 = memref.load %arg4[%c4] : memref<37xf32, #tpu.memory_space<smem>>
    %30 = vector.extract_strided_slice %8 {offsets = [1, 1], sizes = [8, 16], strides = [1, 1]} : vector<16x18xf32> to vector<8x16xf32>
    %31 = vector.broadcast %29 : f32 to vector<8x16xf32>
    %32 = arith.mulf %31, %30 : vector<8x16xf32>
    %33 = arith.addf %28, %32 : vector<8x16xf32>
    %c5 = arith.constant 5 : index
    %34 = memref.load %arg4[%c5] : memref<37xf32, #tpu.memory_space<smem>>
    %35 = vector.extract_strided_slice %8 {offsets = [1, 2], sizes = [8, 16], strides = [1, 1]} : vector<16x18xf32> to vector<8x16xf32>
    %36 = vector.broadcast %34 : f32 to vector<8x16xf32>
    %37 = arith.mulf %36, %35 : vector<8x16xf32>
    %38 = arith.addf %33, %37 : vector<8x16xf32>
    %c6 = arith.constant 6 : index
    %39 = memref.load %arg4[%c6] : memref<37xf32, #tpu.memory_space<smem>>
    %40 = vector.extract_strided_slice %8 {offsets = [2, 0], sizes = [8, 16], strides = [1, 1]} : vector<16x18xf32> to vector<8x16xf32>
    %41 = vector.broadcast %39 : f32 to vector<8x16xf32>
    %42 = arith.mulf %41, %40 : vector<8x16xf32>
    %43 = arith.addf %38, %42 : vector<8x16xf32>
    %c7 = arith.constant 7 : index
    %44 = memref.load %arg4[%c7] : memref<37xf32, #tpu.memory_space<smem>>
    %45 = vector.extract_strided_slice %8 {offsets = [2, 1], sizes = [8, 16], strides = [1, 1]} : vector<16x18xf32> to vector<8x16xf32>
    %46 = vector.broadcast %44 : f32 to vector<8x16xf32>
    %47 = arith.mulf %46, %45 : vector<8x16xf32>
    %48 = arith.addf %43, %47 : vector<8x16xf32>
    %c8_16 = arith.constant 8 : index
    %49 = memref.load %arg4[%c8_16] : memref<37xf32, #tpu.memory_space<smem>>
    %50 = vector.extract_strided_slice %8 {offsets = [2, 2], sizes = [8, 16], strides = [1, 1]} : vector<16x18xf32> to vector<8x16xf32>
    %51 = vector.broadcast %49 : f32 to vector<8x16xf32>
    %52 = arith.mulf %51, %50 : vector<8x16xf32>
    %53 = arith.addf %48, %52 : vector<8x16xf32>
    %c1_17 = arith.constant 1 : index
    %c0_18 = arith.constant 0 : index
    %c0_19 = arith.constant 0 : index
    %54 = vector.load %arg6[%c1_17, %c0_18, %c0_19] : memref<4x16x18xf32, #tpu.memory_space<vmem>>, vector<1x16x18xf32>
    %55 = vector.shape_cast %54 : vector<1x16x18xf32> to vector<16x18xf32>
    %c9 = arith.constant 9 : index
    %56 = memref.load %arg4[%c9] : memref<37xf32, #tpu.memory_space<smem>>
    %57 = vector.extract_strided_slice %55 {offsets = [0, 0], sizes = [8, 16], strides = [1, 1]} : vector<16x18xf32> to vector<8x16xf32>
    %58 = vector.broadcast %56 : f32 to vector<8x16xf32>
    %59 = arith.mulf %58, %57 : vector<8x16xf32>
    %60 = arith.addf %53, %59 : vector<8x16xf32>
    %c10 = arith.constant 10 : index
    %61 = memref.load %arg4[%c10] : memref<37xf32, #tpu.memory_space<smem>>
    %62 = vector.extract_strided_slice %55 {offsets = [0, 1], sizes = [8, 16], strides = [1, 1]} : vector<16x18xf32> to vector<8x16xf32>
    %63 = vector.broadcast %61 : f32 to vector<8x16xf32>
    %64 = arith.mulf %63, %62 : vector<8x16xf32>
    %65 = arith.addf %60, %64 : vector<8x16xf32>
    %c11 = arith.constant 11 : index
    %66 = memref.load %arg4[%c11] : memref<37xf32, #tpu.memory_space<smem>>
    %67 = vector.extract_strided_slice %55 {offsets = [0, 2], sizes = [8, 16], strides = [1, 1]} : vector<16x18xf32> to vector<8x16xf32>
    %68 = vector.broadcast %66 : f32 to vector<8x16xf32>
    %69 = arith.mulf %68, %67 : vector<8x16xf32>
    %70 = arith.addf %65, %69 : vector<8x16xf32>
    %c12 = arith.constant 12 : index
    %71 = memref.load %arg4[%c12] : memref<37xf32, #tpu.memory_space<smem>>
    %72 = vector.extract_strided_slice %55 {offsets = [1, 0], sizes = [8, 16], strides = [1, 1]} : vector<16x18xf32> to vector<8x16xf32>
    %73 = vector.broadcast %71 : f32 to vector<8x16xf32>
    %74 = arith.mulf %73, %72 : vector<8x16xf32>
    %75 = arith.addf %70, %74 : vector<8x16xf32>
    %c13 = arith.constant 13 : index
    %76 = memref.load %arg4[%c13] : memref<37xf32, #tpu.memory_space<smem>>
    %77 = vector.extract_strided_slice %55 {offsets = [1, 1], sizes = [8, 16], strides = [1, 1]} : vector<16x18xf32> to vector<8x16xf32>
    %78 = vector.broadcast %76 : f32 to vector<8x16xf32>
    %79 = arith.mulf %78, %77 : vector<8x16xf32>
    %80 = arith.addf %75, %79 : vector<8x16xf32>
    %c14 = arith.constant 14 : index
    %81 = memref.load %arg4[%c14] : memref<37xf32, #tpu.memory_space<smem>>
    %82 = vector.extract_strided_slice %55 {offsets = [1, 2], sizes = [8, 16], strides = [1, 1]} : vector<16x18xf32> to vector<8x16xf32>
    %83 = vector.broadcast %81 : f32 to vector<8x16xf32>
    %84 = arith.mulf %83, %82 : vector<8x16xf32>
    %85 = arith.addf %80, %84 : vector<8x16xf32>
    %c15 = arith.constant 15 : index
    %86 = memref.load %arg4[%c15] : memref<37xf32, #tpu.memory_space<smem>>
    %87 = vector.extract_strided_slice %55 {offsets = [2, 0], sizes = [8, 16], strides = [1, 1]} : vector<16x18xf32> to vector<8x16xf32>
    %88 = vector.broadcast %86 : f32 to vector<8x16xf32>
    %89 = arith.mulf %88, %87 : vector<8x16xf32>
    %90 = arith.addf %85, %89 : vector<8x16xf32>
    %c16 = arith.constant 16 : index
    %91 = memref.load %arg4[%c16] : memref<37xf32, #tpu.memory_space<smem>>
    %92 = vector.extract_strided_slice %55 {offsets = [2, 1], sizes = [8, 16], strides = [1, 1]} : vector<16x18xf32> to vector<8x16xf32>
    %93 = vector.broadcast %91 : f32 to vector<8x16xf32>
    %94 = arith.mulf %93, %92 : vector<8x16xf32>
    %95 = arith.addf %90, %94 : vector<8x16xf32>
    %c17 = arith.constant 17 : index
    %96 = memref.load %arg4[%c17] : memref<37xf32, #tpu.memory_space<smem>>
    %97 = vector.extract_strided_slice %55 {offsets = [2, 2], sizes = [8, 16], strides = [1, 1]} : vector<16x18xf32> to vector<8x16xf32>
    %98 = vector.broadcast %96 : f32 to vector<8x16xf32>
    %99 = arith.mulf %98, %97 : vector<8x16xf32>
    %100 = arith.addf %95, %99 : vector<8x16xf32>
    %c2_20 = arith.constant 2 : index
    %c0_21 = arith.constant 0 : index
    %c0_22 = arith.constant 0 : index
    %101 = vector.load %arg6[%c2_20, %c0_21, %c0_22] : memref<4x16x18xf32, #tpu.memory_space<vmem>>, vector<1x16x18xf32>
    %102 = vector.shape_cast %101 : vector<1x16x18xf32> to vector<16x18xf32>
    %c18 = arith.constant 18 : index
    %103 = memref.load %arg4[%c18] : memref<37xf32, #tpu.memory_space<smem>>
    %104 = vector.extract_strided_slice %102 {offsets = [0, 0], sizes = [8, 16], strides = [1, 1]} : vector<16x18xf32> to vector<8x16xf32>
    %105 = vector.broadcast %103 : f32 to vector<8x16xf32>
    %106 = arith.mulf %105, %104 : vector<8x16xf32>
    %107 = arith.addf %100, %106 : vector<8x16xf32>
    %c19 = arith.constant 19 : index
    %108 = memref.load %arg4[%c19] : memref<37xf32, #tpu.memory_space<smem>>
    %109 = vector.extract_strided_slice %102 {offsets = [0, 1], sizes = [8, 16], strides = [1, 1]} : vector<16x18xf32> to vector<8x16xf32>
    %110 = vector.broadcast %108 : f32 to vector<8x16xf32>
    %111 = arith.mulf %110, %109 : vector<8x16xf32>
    %112 = arith.addf %107, %111 : vector<8x16xf32>
    %c20 = arith.constant 20 : index
    %113 = memref.load %arg4[%c20] : memref<37xf32, #tpu.memory_space<smem>>
    %114 = vector.extract_strided_slice %102 {offsets = [0, 2], sizes = [8, 16], strides = [1, 1]} : vector<16x18xf32> to vector<8x16xf32>
    %115 = vector.broadcast %113 : f32 to vector<8x16xf32>
    %116 = arith.mulf %115, %114 : vector<8x16xf32>
    %117 = arith.addf %112, %116 : vector<8x16xf32>
    %c21 = arith.constant 21 : index
    %118 = memref.load %arg4[%c21] : memref<37xf32, #tpu.memory_space<smem>>
    %119 = vector.extract_strided_slice %102 {offsets = [1, 0], sizes = [8, 16], strides = [1, 1]} : vector<16x18xf32> to vector<8x16xf32>
    %120 = vector.broadcast %118 : f32 to vector<8x16xf32>
    %121 = arith.mulf %120, %119 : vector<8x16xf32>
    %122 = arith.addf %117, %121 : vector<8x16xf32>
    %c22 = arith.constant 22 : index
    %123 = memref.load %arg4[%c22] : memref<37xf32, #tpu.memory_space<smem>>
    %124 = vector.extract_strided_slice %102 {offsets = [1, 1], sizes = [8, 16], strides = [1, 1]} : vector<16x18xf32> to vector<8x16xf32>
    %125 = vector.broadcast %123 : f32 to vector<8x16xf32>
    %126 = arith.mulf %125, %124 : vector<8x16xf32>
    %127 = arith.addf %122, %126 : vector<8x16xf32>
    %c23 = arith.constant 23 : index
    %128 = memref.load %arg4[%c23] : memref<37xf32, #tpu.memory_space<smem>>
    %129 = vector.extract_strided_slice %102 {offsets = [1, 2], sizes = [8, 16], strides = [1, 1]} : vector<16x18xf32> to vector<8x16xf32>
    %130 = vector.broadcast %128 : f32 to vector<8x16xf32>
    %131 = arith.mulf %130, %129 : vector<8x16xf32>
    %132 = arith.addf %127, %131 : vector<8x16xf32>
    %c24 = arith.constant 24 : index
    %133 = memref.load %arg4[%c24] : memref<37xf32, #tpu.memory_space<smem>>
    %134 = vector.extract_strided_slice %102 {offsets = [2, 0], sizes = [8, 16], strides = [1, 1]} : vector<16x18xf32> to vector<8x16xf32>
    %135 = vector.broadcast %133 : f32 to vector<8x16xf32>
    %136 = arith.mulf %135, %134 : vector<8x16xf32>
    %137 = arith.addf %132, %136 : vector<8x16xf32>
    %c25 = arith.constant 25 : index
    %138 = memref.load %arg4[%c25] : memref<37xf32, #tpu.memory_space<smem>>
    %139 = vector.extract_strided_slice %102 {offsets = [2, 1], sizes = [8, 16], strides = [1, 1]} : vector<16x18xf32> to vector<8x16xf32>
    %140 = vector.broadcast %138 : f32 to vector<8x16xf32>
    %141 = arith.mulf %140, %139 : vector<8x16xf32>
    %142 = arith.addf %137, %141 : vector<8x16xf32>
    %c26 = arith.constant 26 : index
    %143 = memref.load %arg4[%c26] : memref<37xf32, #tpu.memory_space<smem>>
    %144 = vector.extract_strided_slice %102 {offsets = [2, 2], sizes = [8, 16], strides = [1, 1]} : vector<16x18xf32> to vector<8x16xf32>
    %145 = vector.broadcast %143 : f32 to vector<8x16xf32>
    %146 = arith.mulf %145, %144 : vector<8x16xf32>
    %147 = arith.addf %142, %146 : vector<8x16xf32>
    %c3_23 = arith.constant 3 : index
    %c0_24 = arith.constant 0 : index
    %c0_25 = arith.constant 0 : index
    %148 = vector.load %arg6[%c3_23, %c0_24, %c0_25] : memref<4x16x18xf32, #tpu.memory_space<vmem>>, vector<1x16x18xf32>
    %149 = vector.shape_cast %148 : vector<1x16x18xf32> to vector<16x18xf32>
    %c27 = arith.constant 27 : index
    %150 = memref.load %arg4[%c27] : memref<37xf32, #tpu.memory_space<smem>>
    %151 = vector.extract_strided_slice %149 {offsets = [0, 0], sizes = [8, 16], strides = [1, 1]} : vector<16x18xf32> to vector<8x16xf32>
    %152 = vector.broadcast %150 : f32 to vector<8x16xf32>
    %153 = arith.mulf %152, %151 : vector<8x16xf32>
    %154 = arith.addf %147, %153 : vector<8x16xf32>
    %c28 = arith.constant 28 : index
    %155 = memref.load %arg4[%c28] : memref<37xf32, #tpu.memory_space<smem>>
    %156 = vector.extract_strided_slice %149 {offsets = [0, 1], sizes = [8, 16], strides = [1, 1]} : vector<16x18xf32> to vector<8x16xf32>
    %157 = vector.broadcast %155 : f32 to vector<8x16xf32>
    %158 = arith.mulf %157, %156 : vector<8x16xf32>
    %159 = arith.addf %154, %158 : vector<8x16xf32>
    %c29 = arith.constant 29 : index
    %160 = memref.load %arg4[%c29] : memref<37xf32, #tpu.memory_space<smem>>
    %161 = vector.extract_strided_slice %149 {offsets = [0, 2], sizes = [8, 16], strides = [1, 1]} : vector<16x18xf32> to vector<8x16xf32>
    %162 = vector.broadcast %160 : f32 to vector<8x16xf32>
    %163 = arith.mulf %162, %161 : vector<8x16xf32>
    %164 = arith.addf %159, %163 : vector<8x16xf32>
    %c30 = arith.constant 30 : index
    %165 = memref.load %arg4[%c30] : memref<37xf32, #tpu.memory_space<smem>>
    %166 = vector.extract_strided_slice %149 {offsets = [1, 0], sizes = [8, 16], strides = [1, 1]} : vector<16x18xf32> to vector<8x16xf32>
    %167 = vector.broadcast %165 : f32 to vector<8x16xf32>
    %168 = arith.mulf %167, %166 : vector<8x16xf32>
    %169 = arith.addf %164, %168 : vector<8x16xf32>
    %c31 = arith.constant 31 : index
    %170 = memref.load %arg4[%c31] : memref<37xf32, #tpu.memory_space<smem>>
    %171 = vector.extract_strided_slice %149 {offsets = [1, 1], sizes = [8, 16], strides = [1, 1]} : vector<16x18xf32> to vector<8x16xf32>
    %172 = vector.broadcast %170 : f32 to vector<8x16xf32>
    %173 = arith.mulf %172, %171 : vector<8x16xf32>
    %174 = arith.addf %169, %173 : vector<8x16xf32>
    %c32 = arith.constant 32 : index
    %175 = memref.load %arg4[%c32] : memref<37xf32, #tpu.memory_space<smem>>
    %176 = vector.extract_strided_slice %149 {offsets = [1, 2], sizes = [8, 16], strides = [1, 1]} : vector<16x18xf32> to vector<8x16xf32>
    %177 = vector.broadcast %175 : f32 to vector<8x16xf32>
    %178 = arith.mulf %177, %176 : vector<8x16xf32>
    %179 = arith.addf %174, %178 : vector<8x16xf32>
    %c33 = arith.constant 33 : index
    %180 = memref.load %arg4[%c33] : memref<37xf32, #tpu.memory_space<smem>>
    %181 = vector.extract_strided_slice %149 {offsets = [2, 0], sizes = [8, 16], strides = [1, 1]} : vector<16x18xf32> to vector<8x16xf32>
    %182 = vector.broadcast %180 : f32 to vector<8x16xf32>
    %183 = arith.mulf %182, %181 : vector<8x16xf32>
    %184 = arith.addf %179, %183 : vector<8x16xf32>
    %c34 = arith.constant 34 : index
    %185 = memref.load %arg4[%c34] : memref<37xf32, #tpu.memory_space<smem>>
    %186 = vector.extract_strided_slice %149 {offsets = [2, 1], sizes = [8, 16], strides = [1, 1]} : vector<16x18xf32> to vector<8x16xf32>
    %187 = vector.broadcast %185 : f32 to vector<8x16xf32>
    %188 = arith.mulf %187, %186 : vector<8x16xf32>
    %189 = arith.addf %184, %188 : vector<8x16xf32>
    %c35 = arith.constant 35 : index
    %190 = memref.load %arg4[%c35] : memref<37xf32, #tpu.memory_space<smem>>
    %191 = vector.extract_strided_slice %149 {offsets = [2, 2], sizes = [8, 16], strides = [1, 1]} : vector<16x18xf32> to vector<8x16xf32>
    %192 = vector.broadcast %190 : f32 to vector<8x16xf32>
    %193 = arith.mulf %192, %191 : vector<8x16xf32>
    %194 = arith.addf %189, %193 : vector<8x16xf32>
    %c36 = arith.constant 36 : index
    %195 = memref.load %arg4[%c36] : memref<37xf32, #tpu.memory_space<smem>>
    %196 = vector.broadcast %195 : f32 to vector<8x16xf32>
    %197 = arith.addf %194, %196 : vector<8x16xf32>
    %198 = arith.negf %197 : vector<8x16xf32>
    %199 = math.exp %198 : vector<8x16xf32>
    %cst_26 = arith.constant 1.000000e+00 : f32
    %200 = vector.broadcast %cst_26 : f32 to vector<8x16xf32>
    %201 = arith.addf %200, %199 : vector<8x16xf32>
    %202 = arith.divf %200, %201 : vector<8x16xf32>
    %c0_27 = arith.constant 0 : index
    %c0_28 = arith.constant 0 : index
    %c0_29 = arith.constant 0 : index
    %c0_30 = arith.constant 0 : index
    %203 = vector.load %arg5[%c0_27, %c0_28, %c0_29, %c0_30] : memref<1x1x8x16xf32, #tpu.memory_space<vmem>>, vector<1x1x8x16xf32>
    %204 = vector.shape_cast %203 : vector<1x1x8x16xf32> to vector<8x16xf32>
    %205 = vector.shape_cast %202 : vector<8x16xf32> to vector<1x1x8x16xf32>
    tpu.vector_store %arg5[%c0_27, %c0_28, %c0_29, %c0_30], %205 {strides = array<i32>} : memref<1x1x8x16xf32, #tpu.memory_space<vmem>>, vector<1x1x8x16xf32>,
    return
  }
  func.func @transform_0(%arg0: i32, %arg1: i32) -> (i32, i32, i32, i32) {
    %c0_i32 = arith.constant 0 : i32
    %c0_i32_0 = arith.constant 0 : i32
    %c0_i32_1 = arith.constant 0 : i32
    return %arg0, %c0_i32, %arg1, %c0_i32_0 : i32, i32, i32, i32
  }
  func.func @transform_1(%arg0: i32, %arg1: i32) -> (i32, i32, i32, i32) {
    %c1_i32 = arith.constant 1 : i32
    %0 = arith.addi %arg1, %c1_i32 : i32
    %c1_i32_0 = arith.constant 1 : i32
    %1 = arith.muli %0, %c1_i32_0 : i32
    %c0_i32 = arith.constant 0 : i32
    %c0_i32_1 = arith.constant 0 : i32
    %c0_i32_2 = arith.constant 0 : i32
    return %arg0, %c0_i32, %1, %c0_i32_1 : i32, i32, i32, i32
  }
  func.func @transform_2(%arg0: i32, %arg1: i32) -> i32 {
    %c0_i32 = arith.constant 0 : i32
    %c0_i32_0 = arith.constant 0 : i32
    return %c0_i32 : i32
  }
  func.func @transform_3(%arg0: i32, %arg1: i32) -> (i32, i32, i32, i32) {
    %c0_i32 = arith.constant 0 : i32
    %c0_i32_0 = arith.constant 0 : i32
    %c0_i32_1 = arith.constant 0 : i32
    return %arg0, %c0_i32, %arg1, %c0_i32_0 : i32, i32, i32, i32
  }
}

</mosaic_0001>

<llo_original>
// kernel: tpu_custom_call.1
$region0: #{tpu_custom_call.1}
  #allocation0 [shape = 'u32[]', space=smem, size = 0x4, offset = 0x4, fixed_abs, tag = 'smem constant byte address 0x4 - core index']
  #allocation1 [shape = 'u32[144,128]{1,0:T(1,128)}', space=vmem, size = 0x12000, scoped, tag = 'internal scratch']
  #allocation2 [shape = 'f32[4,16,18]{2,1,0:T(8,128)}', space=vmem, size = 0x8000, scoped, tag = 'scratch operand']
  %s0 = inlined_call_operand.vmem [shape: f32[2,4,24,18], index: 0, kind: input, shape index: {}]
  %s1 = inlined_call_operand.vmem [shape: f32[2,4,24,18], index: 1, kind: input, shape index: {}]
  %s2 = inlined_call_operand.vmem [shape: f32[37], index: 2, kind: input, shape index: {}]
  %s3 = inlined_call_operand.hbm [shape: f32[2,1,16,16], index: 3, kind: output, shape index: {}]
  %s4 = sld [smem:[#allocation0]]
  $region125: #{tpu_custom_call.1} parent=0
    _
  %s6 = ssub.s32 1, %s4
  %s7 = scalar_select 0, %s6, %s4
  $region1: #{tpu_custom_call.1} parent=0
    #allocation3 [shape = 'u8[32768]{0}', space=vmem, size = 0x8000, scoped, tag = 'input window, operand 0']
    #allocation4 [shape = 'u8[32768]{0}', space=vmem, size = 0x8000, scoped, tag = 'input window, operand 1']
    #allocation5 [shape = 'u8[512]{0}', space=smem, size = 0x200, scoped, tag = 'input window, operand 2, single buffered']
    #allocation6 [shape = 's32[2]{0}', space=sflag, size = 0x8, scoped, tag = 'scoped memory for tpu_custom_call.1']
    #allocation7 [shape = 's32[2]{0}', space=sflag, size = 0x8, scoped, tag = 'scoped memory for tpu_custom_call.1']
    #allocation8 [shape = 'u8[8192]{0}', space=vmem, size = 0x2000, scoped, tag = 'output window, operand 0']
    %8 = vsyncpa [#allocation7], 0
    %9 = vsyncpa [#allocation6], 0
    %s10 = scalar_lea.sflag [#allocation6], 1
    %11 = vsyncpa %s10, 0
    loop: start=0, step=1, limit=6
    $region2: #{tpu_custom_call.1} parent=1 // loop_pre_header
      _
    $region3: #{tpu_custom_call.1} parent=1 // loop_header
      %s13 = sphi 0, %s17
      %p14 = scmp.ge.s32.totalorder %s13, 6
      %s20 = sphi 0, %s32
      %s21 = sphi 0, %s28
      %s22 = sphi 0, %s20
      %s23 = sphi 0, %s21
      %s24 = sphi 0, %s22
      %s25 = sphi 0, %s23
      %s37 = sphi 0, %s39
      %s40 = sphi 0, %s37
      %s41 = sphi 0, %s40
      %s57 = sphi 0, %s41
      %s67 = sphi 0, %s69
      %s70 = sphi 0, %s67
      %s71 = sphi 0, %s70
      %s87 = sphi 0, %s71
      %s91 = sphi 0, %s91
      %s93 = sphi 0, %s91
      %s94 = sphi 0, %s93
      %s108 = sphi 0, %s94
      %s116 = sphi 0, %s118
      %s119 = sphi 0, %s116
      %s120 = sphi 0, %s119
      %s136 = sphi 0, %s120
    $region4: #{tpu_custom_call.1} parent=1 // loop_header_branch
      %16 = sbr.rel (%p14) target = $region8
    $region5: #{tpu_custom_call.1} parent=1 // loop_body
      %s18 = ssub.s32 %s13, 1
      %s19 = ssub.s32 %s13, 2
      %s26 = sadd.s32 1, %s21
      %p27 = scmp.ge.s32.totalorder %s26, 2
      %s28 = scalar_select %p27, 0, %s26
      %s29 = sadd.s32 1, %s20
      %s30 = scalar_select %p27, %s29, %s20
      %p31 = scmp.ge.s32.totalorder %s30, 2
      %s32 = scalar_select %p31, 0, %s30
      %s33 = ssub.s32 %s20, %s32
      %s34 = ssub.s32 %s21, %s28
      %s35 = sor.u32 %s33, %s34
      %p36 = scmp.eq.s32.totalorder %s35, 0
      %s38 = sadd.s32 %s37, 1
      %s39 = scalar_select %p36, %s37, %s38
      %p42 = pneg %p36
      %p43 = scmp.eq.s32.totalorder %s13, 3
      %p44 = por %p42, %p43
      %p45 = scmp.ne.s32.totalorder %s37, %s40
      %p46 = scmp.eq.s32.totalorder %s13, 0
      %p47 = por %p45, %p46
      %p48 = scmp.ne.s32.totalorder %s37, %s40
      %p49 = scmp.eq.s32.totalorder %s18, 3
      %p50 = por %p48, %p49
      %p51 = scmp.ne.s32.totalorder %s40, %s41
      %p52 = scmp.eq.s32.totalorder %s18, 0
      %p53 = por %p51, %p52
      %p54 = scmp.ne.s32.totalorder %s40, %s41
      %p55 = scmp.eq.s32.totalorder %s19, 3
      %p56 = por %p54, %p55
      %p58 = scmp.ne.s32.totalorder %s41, %s57
      %p59 = scmp.eq.s32.totalorder %s19, 0
      %p60 = por %p58, %p59
      %s61 = sadd.s32 %s21, 1
      %s62 = sadd.s32 %s28, 1
      %s63 = ssub.s32 %s20, %s32
      %s64 = ssub.s32 %s61, %s62
      %s65 = sor.u32 %s63, %s64
      %p66 = scmp.eq.s32.totalorder %s65, 0
      %s68 = sadd.s32 %s67, 1
      %s69 = scalar_select %p66, %s67, %s68
      %p72 = pneg %p66
      %p73 = scmp.eq.s32.totalorder %s13, 3
      %p74 = por %p72, %p73
      %p75 = scmp.ne.s32.totalorder %s67, %s70
      %p76 = scmp.eq.s32.totalorder %s13, 0
      %p77 = por %p75, %p76
      %p78 = scmp.ne.s32.totalorder %s67, %s70
      %p79 = scmp.eq.s32.totalorder %s18, 3
      %p80 = por %p78, %p79
      %p81 = scmp.ne.s32.totalorder %s70, %s71
      %p82 = scmp.eq.s32.totalorder %s18, 0
      %p83 = por %p81, %p82
      %p84 = scmp.ne.s32.totalorder %s70, %s71
      %p85 = scmp.eq.s32.totalorder %s19, 3
      %p86 = por %p84, %p85
      %p88 = scmp.ne.s32.totalorder %s71, %s87
      %p89 = scmp.eq.s32.totalorder %s19, 0
      %p90 = por %p88, %p89
      %s92 = sadd.s32 %s91, 1
      %p95 = scmp.eq.s32.totalorder %s13, 3
      %p96 = scmp.ne.s32.totalorder %s91, %s93
      %p97 = scmp.eq.s32.totalorder %s13, 0
      %p98 = por %p96, %p97
      %p99 = scmp.ne.s32.totalorder %s91, %s93
      %p100 = scmp.eq.s32.totalorder %s18, 3
      %p101 = por %p99, %p100
      %p102 = scmp.ne.s32.totalorder %s93, %s94
      %p103 = scmp.eq.s32.totalorder %s18, 0
      %p104 = por %p102, %p103
      %p105 = scmp.ne.s32.totalorder %s93, %s94
      %p106 = scmp.eq.s32.totalorder %s19, 3
      %p107 = por %p105, %p106
      %p109 = scmp.ne.s32.totalorder %s94, %s108
      %p110 = scmp.eq.s32.totalorder %s19, 0
      %p111 = por %p109, %p110
      %s112 = ssub.s32 %s20, %s32
      %s113 = ssub.s32 %s21, %s28
      %s114 = sor.u32 %s112, %s113
      %p115 = scmp.eq.s32.totalorder %s114, 0
      %s117 = sadd.s32 %s116, 1
      %s118 = scalar_select %p115, %s116, %s117
      %p121 = pneg %p115
      %p122 = scmp.eq.s32.totalorder %s13, 3
      %p123 = por %p121, %p122
      %p124 = scmp.ne.s32.totalorder %s116, %s119
      %p125 = scmp.eq.s32.totalorder %s13, 0
      %p126 = por %p124, %p125
      %p127 = scmp.ne.s32.totalorder %s116, %s119
      %p128 = scmp.eq.s32.totalorder %s18, 3
      %p129 = por %p127, %p128
      %p130 = scmp.ne.s32.totalorder %s119, %s120
      %p131 = scmp.eq.s32.totalorder %s18, 0
      %p132 = por %p130, %p131
      %p133 = scmp.ne.s32.totalorder %s119, %s120
      %p134 = scmp.eq.s32.totalorder %s19, 3
      %p135 = por %p133, %p134
      %p137 = scmp.ne.s32.totalorder %s120, %s136
      %p138 = scmp.eq.s32.totalorder %s19, 0
      %p139 = por %p137, %p138
      %p140 = scmp.le.s32.totalorder 1, %s13
      %p141 = scmp.lt.s32.totalorder %s13, 5
      %p142 = pnand %p140, %p141
      %p143 = pneg %p142
      // Predicated region
      $region9: #{tpu_custom_call.1} parent=5 // pred_check
        _
      $region10: #{tpu_custom_call.1} parent=5 // pred_check_branch
        %145 = sbr.rel (%p142) target = $region12
      $region11: #{tpu_custom_call.1} parent=5 // pred_region
        %s146 = ssub.s32 %s13, 1
        // Predicated region
        $region13: #{tpu_custom_call.1} parent=11 // pred_check
          %p147 = pneg %p104
        $region14: #{tpu_custom_call.1} parent=11 // pred_check_branch
          %149 = sbr.rel (%p147) target = $region16
        $region15: #{tpu_custom_call.1} parent=11 // pred_region
          %s151 = ssub.s32 16, 16
          %152 = vsyncadd [#allocation7], %s151
          %s154 = sshll.u32 %s2, 4
          %s155 = int_to_ptr.vmem [resolvable:$true] %s154
          %157 = dma.vmem_to_smem %s155, 16, [#allocation5], [#allocation7]
        $region16: #{tpu_custom_call.1} parent=11 // pred_fallthru
          _
      $region12: #{tpu_custom_call.1} parent=5 // pred_fallthru
        _
      %p158 = scmp.lt.s32.totalorder %s13, 4
      // Predicated region
      $region17: #{tpu_custom_call.1} parent=5 // pred_check
        %p159 = pneg %p158
      $region18: #{tpu_custom_call.1} parent=5 // pred_check_branch
        %161 = sbr.rel (%p159) target = $region20
      $region19: #{tpu_custom_call.1} parent=5 // pred_region
        // Predicated region
        $region21: #{tpu_custom_call.1} parent=19 // pred_check
          %p162 = pneg %p47
        $region22: #{tpu_custom_call.1} parent=19 // pred_check_branch
          %164 = sbr.rel (%p162) target = $region24
        $region23: #{tpu_custom_call.1} parent=19 // pred_region
          %s165 = sand.u32 %s37, 1
          %s166 = sand.u32 %s37, 1
          %s167 = smul.addr %s166, 32
          %s168 = scalar_lea.vmem [#allocation3], %s167
          %s169 = smul.addr %s20, 12
          %s170 = sadd.s32 %s21, %s169
          %s171 = smul.addr %s170, 8
          %s172 = scalar_lea.vmem %s0, %s171
          // Predicated region
          $region25: #{tpu_custom_call.1} parent=23 // pred_check
            _
          $region26: #{tpu_custom_call.1} parent=23 // pred_check_branch
            %174 = sbr.rel (0) target = $region28
          $region27: #{tpu_custom_call.1} parent=23 // pred_region
            // Predicated region
            $region29: #{tpu_custom_call.1} parent=27 // pred_check
              _
            $region30: #{tpu_custom_call.1} parent=27 // pred_check_branch
              %176 = sbr.rel (0) target = $region32
            $region31: #{tpu_custom_call.1} parent=27 // pred_region
              // Predicated region
              $region44: #{tpu_custom_call.1} parent=31 // pred_check
                _
              $region45: #{tpu_custom_call.1} parent=31 // pred_check_branch
                %197 = sbr.rel (0) target = $region47
              $region46: #{tpu_custom_call.1} parent=31 // pred_region
                loop: start=0, step=1, limit=1
                $region48: #{tpu_custom_call.1} parent=46 // loop_pre_header
                  _
                $region49: #{tpu_custom_call.1} parent=46 // loop_header
                  %s199 = sphi 0, %s203
                  %p200 = scmp.ge.s32.totalorder %s199, 1
                  %s204 = sphi %s172, %s172
                  %s205 = sphi %s168, %s168
                $region50: #{tpu_custom_call.1} parent=46 // loop_header_branch
                  %202 = sbr.rel (%p200) target = $region54
                $region51: #{tpu_custom_call.1} parent=46 // loop_body
                  %v206 = vld [vmem:[%s204] sm:$0xff]
                  %207 = vst [vmem:[%s205] sm:$0xff] %v206
                  %v208 = vld [vmem:[%s204 + $0x18] sm:$0xff]
                  %209 = vst [vmem:[%s205 + $0x8] sm:$0xff] %v208
                  %v210 = vld [vmem:[%s204 + $0x30] sm:$0xff]
                  %211 = vst [vmem:[%s205 + $0x10] sm:$0xff] %v210
                  %v212 = vld [vmem:[%s204 + $0x48] sm:$0xff]
                  %213 = vst [vmem:[%s205 + $0x18] sm:$0xff] %v212
                $region52: #{tpu_custom_call.1} parent=46 // loop_footer
                  %s203 = sadd.s32 1, %s199
                $region53: #{tpu_custom_call.1} parent=46 // loop_footer_branch
                  %198 = sbr.rel target = $region49
                $region54: #{tpu_custom_call.1} parent=46 // loop_exit
                  _
              $region47: #{tpu_custom_call.1} parent=31 // pred_fallthru
                _
              // Predicated region
              $region55: #{tpu_custom_call.1} parent=31 // pred_check
                _
              $region56: #{tpu_custom_call.1} parent=31 // pred_check_branch
                %215 = sbr.rel target = $region58
              $region57: #{tpu_custom_call.1} parent=31 // pred_region
                _
              $region58: #{tpu_custom_call.1} parent=31 // pred_fallthru
                _
            $region32: #{tpu_custom_call.1} parent=27 // pred_fallthru
              _
            // Predicated region
            $region33: #{tpu_custom_call.1} parent=27 // pred_check
              _
            $region34: #{tpu_custom_call.1} parent=27 // pred_check_branch
              %178 = sbr.rel target = $region36
            $region35: #{tpu_custom_call.1} parent=27 // pred_region
              loop: start=0, step=1, limit=1
              $region37: #{tpu_custom_call.1} parent=35 // loop_pre_header
                _
              $region38: #{tpu_custom_call.1} parent=35 // loop_header
                %s181 = sphi 0, %s185
                %p182 = scmp.ge.s32.totalorder %s181, 1
                %s186 = sphi %s172, %s172
                %s187 = sphi %s168, %s168
              $region39: #{tpu_custom_call.1} parent=35 // loop_header_branch
                %184 = sbr.rel (%p182) target = $region43
              $region40: #{tpu_custom_call.1} parent=35 // loop_body
                %v188 = vld [vmem:[%s186] sm:$0xff]
                %189 = vst [vmem:[%s187] sm:$0xff] %v188
                %v190 = vld [vmem:[%s186 + $0x18] sm:$0xff]
                %191 = vst [vmem:[%s187 + $0x8] sm:$0xff] %v190
                %v192 = vld [vmem:[%s186 + $0x30] sm:$0xff]
                %193 = vst [vmem:[%s187 + $0x10] sm:$0xff] %v192
                %v194 = vld [vmem:[%s186 + $0x48] sm:$0xff]
                %195 = vst [vmem:[%s187 + $0x18] sm:$0xff] %v194
              $region41: #{tpu_custom_call.1} parent=35 // loop_footer
                %s185 = sadd.s32 1, %s181
              $region42: #{tpu_custom_call.1} parent=35 // loop_footer_branch
                %180 = sbr.rel target = $region38
              $region43: #{tpu_custom_call.1} parent=35 // loop_exit
                _
            $region36: #{tpu_custom_call.1} parent=27 // pred_fallthru
              _
          $region28: #{tpu_custom_call.1} parent=23 // pred_fallthru
            _
          %216 = vnop
        $region24: #{tpu_custom_call.1} parent=19 // pred_fallthru
          _
        // Predicated region
        $region59: #{tpu_custom_call.1} parent=19 // pred_check
          %p217 = pneg %p77
        $region60: #{tpu_custom_call.1} parent=19 // pred_check_branch
          %219 = sbr.rel (%p217) target = $region62
        $region61: #{tpu_custom_call.1} parent=19 // pred_region
          %s220 = sand.u32 %s67, 1
          %s221 = sand.u32 %s67, 1
          %s222 = smul.addr %s221, 32
          %s223 = scalar_lea.vmem [#allocation4], %s222
          %s224 = sadd.s32 %s21, 1
          %s225 = smul.addr %s20, 12
          %s226 = sadd.s32 %s224, %s225
          %s227 = smul.addr %s226, 8
          %s228 = scalar_lea.vmem %s1, %s227
          // Predicated region
          $region63: #{tpu_custom_call.1} parent=61 // pred_check
            _
          $region64: #{tpu_custom_call.1} parent=61 // pred_check_branch
            %230 = sbr.rel (0) target = $region66
          $region65: #{tpu_custom_call.1} parent=61 // pred_region
            // Predicated region
            $region67: #{tpu_custom_call.1} parent=65 // pred_check
              _
            $region68: #{tpu_custom_call.1} parent=65 // pred_check_branch
              %232 = sbr.rel (0) target = $region70
            $region69: #{tpu_custom_call.1} parent=65 // pred_region
              // Predicated region
              $region82: #{tpu_custom_call.1} parent=69 // pred_check
                _
              $region83: #{tpu_custom_call.1} parent=69 // pred_check_branch
                %253 = sbr.rel (0) target = $region85
              $region84: #{tpu_custom_call.1} parent=69 // pred_region
                loop: start=0, step=1, limit=1
                $region86: #{tpu_custom_call.1} parent=84 // loop_pre_header
                  _
                $region87: #{tpu_custom_call.1} parent=84 // loop_header
                  %s255 = sphi 0, %s259
                  %p256 = scmp.ge.s32.totalorder %s255, 1
                  %s260 = sphi %s228, %s228
                  %s261 = sphi %s223, %s223
                $region88: #{tpu_custom_call.1} parent=84 // loop_header_branch
                  %258 = sbr.rel (%p256) target = $region92
                $region89: #{tpu_custom_call.1} parent=84 // loop_body
                  %v262 = vld [vmem:[%s260] sm:$0xff]
                  %263 = vst [vmem:[%s261] sm:$0xff] %v262
                  %v264 = vld [vmem:[%s260 + $0x18] sm:$0xff]
                  %265 = vst [vmem:[%s261 + $0x8] sm:$0xff] %v264
                  %v266 = vld [vmem:[%s260 + $0x30] sm:$0xff]
                  %267 = vst [vmem:[%s261 + $0x10] sm:$0xff] %v266
                  %v268 = vld [vmem:[%s260 + $0x48] sm:$0xff]
                  %269 = vst [vmem:[%s261 + $0x18] sm:$0xff] %v268
                $region90: #{tpu_custom_call.1} parent=84 // loop_footer
                  %s259 = sadd.s32 1, %s255
                $region91: #{tpu_custom_call.1} parent=84 // loop_footer_branch
                  %254 = sbr.rel target = $region87
                $region92: #{tpu_custom_call.1} parent=84 // loop_exit
                  _
              $region85: #{tpu_custom_call.1} parent=69 // pred_fallthru
                _
              // Predicated region
              $region93: #{tpu_custom_call.1} parent=69 // pred_check
                _
              $region94: #{tpu_custom_call.1} parent=69 // pred_check_branch
                %271 = sbr.rel target = $region96
              $region95: #{tpu_custom_call.1} parent=69 // pred_region
                _
              $region96: #{tpu_custom_call.1} parent=69 // pred_fallthru
                _
            $region70: #{tpu_custom_call.1} parent=65 // pred_fallthru
              _
            // Predicated region
            $region71: #{tpu_custom_call.1} parent=65 // pred_check
              _
            $region72: #{tpu_custom_call.1} parent=65 // pred_check_branch
              %234 = sbr.rel target = $region74
            $region73: #{tpu_custom_call.1} parent=65 // pred_region
              loop: start=0, step=1, limit=1
              $region75: #{tpu_custom_call.1} parent=73 // loop_pre_header
                _
              $region76: #{tpu_custom_call.1} parent=73 // loop_header
                %s237 = sphi 0, %s241
                %p238 = scmp.ge.s32.totalorder %s237, 1
                %s242 = sphi %s228, %s228
                %s243 = sphi %s223, %s223
              $region77: #{tpu_custom_call.1} parent=73 // loop_header_branch
                %240 = sbr.rel (%p238) target = $region81
              $region78: #{tpu_custom_call.1} parent=73 // loop_body
                %v244 = vld [vmem:[%s242] sm:$0xff]
                %245 = vst [vmem:[%s243] sm:$0xff] %v244
                %v246 = vld [vmem:[%s242 + $0x18] sm:$0xff]
                %247 = vst [vmem:[%s243 + $0x8] sm:$0xff] %v246
                %v248 = vld [vmem:[%s242 + $0x30] sm:$0xff]
                %249 = vst [vmem:[%s243 + $0x10] sm:$0xff] %v248
                %v250 = vld [vmem:[%s242 + $0x48] sm:$0xff]
                %251 = vst [vmem:[%s243 + $0x18] sm:$0xff] %v250
              $region79: #{tpu_custom_call.1} parent=73 // loop_footer
                %s241 = sadd.s32 1, %s237
              $region80: #{tpu_custom_call.1} parent=73 // loop_footer_branch
                %236 = sbr.rel target = $region76
              $region81: #{tpu_custom_call.1} parent=73 // loop_exit
                _
            $region74: #{tpu_custom_call.1} parent=65 // pred_fallthru
              _
          $region66: #{tpu_custom_call.1} parent=61 // pred_fallthru
            _
          %272 = vnop
        $region62: #{tpu_custom_call.1} parent=19 // pred_fallthru
          _
      $region20: #{tpu_custom_call.1} parent=5 // pred_fallthru
        _
      %p273 = scmp.le.s32.totalorder 1, %s13
      %p274 = scmp.lt.s32.totalorder %s13, 5
      %p275 = pnand %p273, %p274
      %p276 = pneg %p275
      // Predicated region
      $region97: #{tpu_custom_call.1} parent=5 // pred_check
        _
      $region98: #{tpu_custom_call.1} parent=5 // pred_check_branch
        %278 = sbr.rel (%p275) target = $region100
      $region99: #{tpu_custom_call.1} parent=5 // pred_region
        %s279 = ssub.s32 %s13, 1
        %s280 = sand.u32 %s40, 1
        %s281 = sand.u32 %s40, 1
        %s282 = smul.addr %s281, 32
        %s283 = scalar_lea.vmem [#allocation3], %s282
        // Predicated region
        $region101: #{tpu_custom_call.1} parent=99 // pred_check
          %p284 = pneg %p53
        $region102: #{tpu_custom_call.1} parent=99 // pred_check_branch
          %286 = sbr.rel (%p284) target = $region104
        $region103: #{tpu_custom_call.1} parent=99 // pred_region
          _
        $region104: #{tpu_custom_call.1} parent=99 // pred_fallthru
          _
        %s287 = sand.u32 %s70, 1
        %s288 = sand.u32 %s70, 1
        %s289 = smul.addr %s288, 32
        %s290 = scalar_lea.vmem [#allocation4], %s289
        // Predicated region
        $region105: #{tpu_custom_call.1} parent=99 // pred_check
          %p291 = pneg %p83
        $region106: #{tpu_custom_call.1} parent=99 // pred_check_branch
          %293 = sbr.rel (%p291) target = $region108
        $region107: #{tpu_custom_call.1} parent=99 // pred_region
          _
        $region108: #{tpu_custom_call.1} parent=99 // pred_fallthru
          _
        // Predicated region
        $region109: #{tpu_custom_call.1} parent=99 // pred_check
          %p294 = pneg %p104
        $region110: #{tpu_custom_call.1} parent=99 // pred_check_branch
          %296 = sbr.rel (%p294) target = $region112
        $region111: #{tpu_custom_call.1} parent=99 // pred_region
          %297 = dma.done [#allocation7], 16
        $region112: #{tpu_custom_call.1} parent=99 // pred_fallthru
          _
        %298 = sfence
        %s299 = sand.u32 %s40, 1
        %s300 = sand.u32 %s40, 1
        %s301 = smul.addr %s300, 32
        %s302 = scalar_lea.vmem [#allocation3], %s301
        %p303 = pneg %p53
        %p304 = pneg %p50
        %s305 = sand.u32 %s70, 1
        %s306 = sand.u32 %s70, 1
        %s307 = smul.addr %s306, 32
        %s308 = scalar_lea.vmem [#allocation4], %s307
        %p309 = pneg %p83
        %p310 = pneg %p80
        %p311 = pneg %p104
        %p312 = pneg %p101
        %p313 = pneg %p132
        %p314 = pneg %p129
        %s315 = sand.u32 %s119, 1
        %s316 = scalar_lea.sflag [#allocation6], %s315
        %s317 = sand.u32 %s119, 1
        %s318 = smul.addr %s317, 8
        %s319 = scalar_lea.vmem [#allocation8], %s318
        %s320 = sadd.s32 %s23, 1
        %v321 = vld [vmem:[%s283] sm:$0xff]
        %v322 = vld [vmem:[%s283 + $0x8] sm:$0xff]
        %v323 = vld [vmem:[%s283 + $0x10] sm:$0xff]
        %v324 = vld [vmem:[%s283 + $0x18] sm:$0xff]
        %vm325 = vcmask 146432
        %326 = vst.msk [vmem:[#allocation2] sm:$0xff] %vm325, %v321
        %327 = vst.msk [vmem:[#allocation2 + $0x10] sm:$0xff] %vm325, %v322
        %328 = vst.msk [vmem:[#allocation2 + $0x20] sm:$0xff] %vm325, %v323
        %329 = vst.msk [vmem:[#allocation2 + $0x30] sm:$0xff] %vm325, %v324
        %v330 = vld [vmem:[%s290] sm:$0xff]
        %v331 = vld [vmem:[%s290 + $0x8] sm:$0xff]
        %v332 = vld [vmem:[%s290 + $0x10] sm:$0xff]
        %v333 = vld [vmem:[%s290 + $0x18] sm:$0xff]
        %334 = vst.msk [vmem:[#allocation2 + $0x8] sm:$0xff] %vm325, %v330
        %335 = vst.msk [vmem:[#allocation2 + $0x18] sm:$0xff] %vm325, %v331
        %336 = vst.msk [vmem:[#allocation2 + $0x28] sm:$0xff] %vm325, %v332
        %337 = vst.msk [vmem:[#allocation2 + $0x38] sm:$0xff] %vm325, %v333
        %v338 = vld [vmem:[#allocation2] sm:$0xff]
        %v339 = vld [vmem:[#allocation2 + $0x8] sm:$0xff]
        %s340 = sld [smem:[#allocation5]]
        %v341 = vstv %s340
        %v342 = vmul.f32 %v341, %v338
        %v343 = vadd.f32 %v342, 0.0
        %s344 = sld [smem:[#allocation5 + $0x1]]
        %v345 = vstv %s344
        %v346 = vmul.f32 %v345, %v338
        %348 = vrot.lane.b32.xlu0 %v346, 127
        %v349 = vpop.permute.xlu0 %348
        %v351 = vadd.f32 %v343, %v349
        %s352 = sld [smem:[#allocation5 + $0x2]]
        %v353 = vstv %s352
        %v354 = vmul.f32 %v353, %v338
        %356 = vrot.lane.b32.xlu0 %v354, 126
        %v357 = vpop.permute.xlu0 %356
        %v359 = vadd.f32 %v351, %v357
        %s360 = sld [smem:[#allocation5 + $0x3]]
        %v361 = vstv %s360
        %v362 = vmul.f32 %v361, %v338
        %v363 = vmul.f32 %v361, %v339
        %vm366 = vcmask 1046528
        %v367 = vrot.slane %v362, 1
        %v368 = vrot.slane %v363, 1
        %v369 = vsel %vm366, %v367, %v368
        %v371 = vadd.f32 %v359, %v369
        %s372 = sld [smem:[#allocation5 + $0x4]]
        %v373 = vstv %s372
        %v374 = vmul.f32 %v373, %v338
        %v375 = vmul.f32 %v373, %v339
        %v378 = vrot.slane %v374, 1
        %v379 = vrot.slane %v375, 1
        %v380 = vsel %vm366, %v378, %v379
        %381 = vrot.lane.b32.xlu0 %v380, 127
        %v382 = vpop.permute.xlu0 %381
        %v384 = vadd.f32 %v371, %v382
        %s385 = sld [smem:[#allocation5 + $0x5]]
        %v386 = vstv %s385
        %v387 = vmul.f32 %v386, %v338
        %v388 = vmul.f32 %v386, %v339
        %v391 = vrot.slane %v387, 1
        %v392 = vrot.slane %v388, 1
        %v393 = vsel %vm366, %v391, %v392
        %394 = vrot.lane.b32.xlu0 %v393, 126
        %v395 = vpop.permute.xlu0 %394
        %v397 = vadd.f32 %v384, %v395
        %s398 = sld [smem:[#allocation5 + $0x6]]
        %v399 = vstv %s398
        %v400 = vmul.f32 %v399, %v338
        %v401 = vmul.f32 %v399, %v339
        %vm404 = vcmask 1045504
        %v405 = vrot.slane %v400, 2
        %v406 = vrot.slane %v401, 2
        %v407 = vsel %vm404, %v405, %v406
        %v409 = vadd.f32 %v397, %v407
        %s410 = sld [smem:[#allocation5 + $0x7]]
        %v411 = vstv %s410
        %v412 = vmul.f32 %v411, %v338
        %v413 = vmul.f32 %v411, %v339
        %v416 = vrot.slane %v412, 2
        %v417 = vrot.slane %v413, 2
        %v418 = vsel %vm404, %v416, %v417
        %419 = vrot.lane.b32.xlu0 %v418, 127
        %v420 = vpop.permute.xlu0 %419
        %v422 = vadd.f32 %v409, %v420
        %s423 = sld [smem:[#allocation5 + $0x8]]
        %v424 = vstv %s423
        %v425 = vmul.f32 %v424, %v338
        %v426 = vmul.f32 %v424, %v339
        %v429 = vrot.slane %v425, 2
        %v430 = vrot.slane %v426, 2
        %v431 = vsel %vm404, %v429, %v430
        %432 = vrot.lane.b32.xlu0 %v431, 126
        %v433 = vpop.permute.xlu0 %432
        %v435 = vadd.f32 %v422, %v433
        %s436 = scalar_lea.vmem [#allocation2], 16
        %v437 = vld [vmem:[%s436] sm:$0xff]
        %v438 = vld [vmem:[%s436 + $0x8] sm:$0xff]
        %s439 = sld [smem:[#allocation5 + $0x9]]
        %v440 = vstv %s439
        %v441 = vmul.f32 %v440, %v437
        %v442 = vadd.f32 %v435, %v441
        %s443 = sld [smem:[#allocation5 + $0xa]]
        %v444 = vstv %s443
        %v445 = vmul.f32 %v444, %v437
        %447 = vrot.lane.b32.xlu0 %v445, 127
        %v448 = vpop.permute.xlu0 %447
        %v450 = vadd.f32 %v442, %v448
        %s451 = sld [smem:[#allocation5 + $0xb]]
        %v452 = vstv %s451
        %v453 = vmul.f32 %v452, %v437
        %455 = vrot.lane.b32.xlu0 %v453, 126
        %v456 = vpop.permute.xlu0 %455
        %v458 = vadd.f32 %v450, %v456
        %s459 = sld [smem:[#allocation5 + $0xc]]
        %v460 = vstv %s459
        %v461 = vmul.f32 %v460, %v437
        %v462 = vmul.f32 %v460, %v438
        %v465 = vrot.slane %v461, 1
        %v466 = vrot.slane %v462, 1
        %v467 = vsel %vm366, %v465, %v466
        %v469 = vadd.f32 %v458, %v467
        %s470 = sld [smem:[#allocation5 + $0xd]]
        %v471 = vstv %s470
        %v472 = vmul.f32 %v471, %v437
        %v473 = vmul.f32 %v471, %v438
        %v476 = vrot.slane %v472, 1
        %v477 = vrot.slane %v473, 1
        %v478 = vsel %vm366, %v476, %v477
        %479 = vrot.lane.b32.xlu0 %v478, 127
        %v480 = vpop.permute.xlu0 %479
        %v482 = vadd.f32 %v469, %v480
        %s483 = sld [smem:[#allocation5 + $0xe]]
        %v484 = vstv %s483
        %v485 = vmul.f32 %v484, %v437
        %v486 = vmul.f32 %v484, %v438
        %v489 = vrot.slane %v485, 1
        %v490 = vrot.slane %v486, 1
        %v491 = vsel %vm366, %v489, %v490
        %492 = vrot.lane.b32.xlu0 %v491, 126
        %v493 = vpop.permute.xlu0 %492
        %v495 = vadd.f32 %v482, %v493
        %s496 = sld [smem:[#allocation5 + $0xf]]
        %v497 = vstv %s496
        %v498 = vmul.f32 %v497, %v437
        %v499 = vmul.f32 %v497, %v438
        %v502 = vrot.slane %v498, 2
        %v503 = vrot.slane %v499, 2
        %v504 = vsel %vm404, %v502, %v503
        %v506 = vadd.f32 %v495, %v504
        %s507 = sld [smem:[#allocation5 + $0x10]]
        %v508 = vstv %s507
        %v509 = vmul.f32 %v508, %v437
        %v510 = vmul.f32 %v508, %v438
        %v513 = vrot.slane %v509, 2
        %v514 = vrot.slane %v510, 2
        %v515 = vsel %vm404, %v513, %v514
        %516 = vrot.lane.b32.xlu0 %v515, 127
        %v517 = vpop.permute.xlu0 %516
        %v519 = vadd.f32 %v506, %v517
        %s520 = sld [smem:[#allocation5 + $0x11]]
        %v521 = vstv %s520
        %v522 = vmul.f32 %v521, %v437
        %v523 = vmul.f32 %v521, %v438
        %v526 = vrot.slane %v522, 2
        %v527 = vrot.slane %v523, 2
        %v528 = vsel %vm404, %v526, %v527
        %529 = vrot.lane.b32.xlu0 %v528, 126
        %v530 = vpop.permute.xlu0 %529
        %v532 = vadd.f32 %v519, %v530
        %s533 = scalar_lea.vmem [#allocation2], 32
        %v534 = vld [vmem:[%s533] sm:$0xff]
        %v535 = vld [vmem:[%s533 + $0x8] sm:$0xff]
        %s536 = sld [smem:[#allocation5 + $0x12]]
        %v537 = vstv %s536
        %v538 = vmul.f32 %v537, %v534
        %v539 = vadd.f32 %v532, %v538
        %s540 = sld [smem:[#allocation5 + $0x13]]
        %v541 = vstv %s540
        %v542 = vmul.f32 %v541, %v534
        %544 = vrot.lane.b32.xlu0 %v542, 127
        %v545 = vpop.permute.xlu0 %544
        %v547 = vadd.f32 %v539, %v545
        %s548 = sld [smem:[#allocation5 + $0x14]]
        %v549 = vstv %s548
        %v550 = vmul.f32 %v549, %v534
        %552 = vrot.lane.b32.xlu0 %v550, 126
        %v553 = vpop.permute.xlu0 %552
        %v555 = vadd.f32 %v547, %v553
        %s556 = sld [smem:[#allocation5 + $0x15]]
        %v557 = vstv %s556
        %v558 = vmul.f32 %v557, %v534
        %v559 = vmul.f32 %v557, %v535
        %v562 = vrot.slane %v558, 1
        %v563 = vrot.slane %v559, 1
        %v564 = vsel %vm366, %v562, %v563
        %v566 = vadd.f32 %v555, %v564
        %s567 = sld [smem:[#allocation5 + $0x16]]
        %v568 = vstv %s567
        %v569 = vmul.f32 %v568, %v534
        %v570 = vmul.f32 %v568, %v535
        %v573 = vrot.slane %v569, 1
        %v574 = vrot.slane %v570, 1
        %v575 = vsel %vm366, %v573, %v574
        %576 = vrot.lane.b32.xlu0 %v575, 127
        %v577 = vpop.permute.xlu0 %576
        %v579 = vadd.f32 %v566, %v577
        %s580 = sld [smem:[#allocation5 + $0x17]]
        %v581 = vstv %s580
        %v582 = vmul.f32 %v581, %v534
        %v583 = vmul.f32 %v581, %v535
        %v586 = vrot.slane %v582, 1
        %v587 = vrot.slane %v583, 1
        %v588 = vsel %vm366, %v586, %v587
        %589 = vrot.lane.b32.xlu0 %v588, 126
        %v590 = vpop.permute.xlu0 %589
        %v592 = vadd.f32 %v579, %v590
        %s593 = sld [smem:[#allocation5 + $0x18]]
        %v594 = vstv %s593
        %v595 = vmul.f32 %v594, %v534
        %v596 = vmul.f32 %v594, %v535
        %v599 = vrot.slane %v595, 2
        %v600 = vrot.slane %v596, 2
        %v601 = vsel %vm404, %v599, %v600
        %v603 = vadd.f32 %v592, %v601
        %s604 = sld [smem:[#allocation5 + $0x19]]
        %v605 = vstv %s604
        %v606 = vmul.f32 %v605, %v534
        %v607 = vmul.f32 %v605, %v535
        %v610 = vrot.slane %v606, 2
        %v611 = vrot.slane %v607, 2
        %v612 = vsel %vm404, %v610, %v611
        %613 = vrot.lane.b32.xlu0 %v612, 127
        %v614 = vpop.permute.xlu0 %613
        %v616 = vadd.f32 %v603, %v614
        %s617 = sld [smem:[#allocation5 + $0x1a]]
        %v618 = vstv %s617
        %v619 = vmul.f32 %v618, %v534
        %v620 = vmul.f32 %v618, %v535
        %v623 = vrot.slane %v619, 2
        %v624 = vrot.slane %v620, 2
        %v625 = vsel %vm404, %v623, %v624
        %626 = vrot.lane.b32.xlu0 %v625, 126
        %v627 = vpop.permute.xlu0 %626
        %v629 = vadd.f32 %v616, %v627
        %s630 = scalar_lea.vmem [#allocation2], 48
        %v631 = vld [vmem:[%s630] sm:$0xff]
        %v632 = vld [vmem:[%s630 + $0x8] sm:$0xff]
        %s633 = sld [smem:[#allocation5 + $0x1b]]
        %v634 = vstv %s633
        %v635 = vmul.f32 %v634, %v631
        %v636 = vadd.f32 %v629, %v635
        %s637 = sld [smem:[#allocation5 + $0x1c]]
        %v638 = vstv %s637
        %v639 = vmul.f32 %v638, %v631
        %641 = vrot.lane.b32.xlu0 %v639, 127
        %v642 = vpop.permute.xlu0 %641
        %v644 = vadd.f32 %v636, %v642
        %s645 = sld [smem:[#allocation5 + $0x1d]]
        %v646 = vstv %s645
        %v647 = vmul.f32 %v646, %v631
        %649 = vrot.lane.b32.xlu0 %v647, 126
        %v650 = vpop.permute.xlu0 %649
        %v652 = vadd.f32 %v644, %v650
        %s653 = sld [smem:[#allocation5 + $0x1e]]
        %v654 = vstv %s653
        %v655 = vmul.f32 %v654, %v631
        %v656 = vmul.f32 %v654, %v632
        %v659 = vrot.slane %v655, 1
        %v660 = vrot.slane %v656, 1
        %v661 = vsel %vm366, %v659, %v660
        %v663 = vadd.f32 %v652, %v661
        %s664 = sld [smem:[#allocation5 + $0x1f]]
        %v665 = vstv %s664
        %v666 = vmul.f32 %v665, %v631
        %v667 = vmul.f32 %v665, %v632
        %v670 = vrot.slane %v666, 1
        %v671 = vrot.slane %v667, 1
        %v672 = vsel %vm366, %v670, %v671
        %673 = vrot.lane.b32.xlu0 %v672, 127
        %v674 = vpop.permute.xlu0 %673
        %v676 = vadd.f32 %v663, %v674
        %s677 = sld [smem:[#allocation5 + $0x20]]
        %v678 = vstv %s677
        %v679 = vmul.f32 %v678, %v631
        %v680 = vmul.f32 %v678, %v632
        %v683 = vrot.slane %v679, 1
        %v684 = vrot.slane %v680, 1
        %v685 = vsel %vm366, %v683, %v684
        %686 = vrot.lane.b32.xlu0 %v685, 126
        %v687 = vpop.permute.xlu0 %686
        %v689 = vadd.f32 %v676, %v687
        %s690 = sld [smem:[#allocation5 + $0x21]]
        %v691 = vstv %s690
        %v692 = vmul.f32 %v691, %v631
        %v693 = vmul.f32 %v691, %v632
        %v696 = vrot.slane %v692, 2
        %v697 = vrot.slane %v693, 2
        %v698 = vsel %vm404, %v696, %v697
        %v700 = vadd.f32 %v689, %v698
        %s701 = sld [smem:[#allocation5 + $0x22]]
        %v702 = vstv %s701
        %v703 = vmul.f32 %v702, %v631
        %v704 = vmul.f32 %v702, %v632
        %v707 = vrot.slane %v703, 2
        %v708 = vrot.slane %v704, 2
        %v709 = vsel %vm404, %v707, %v708
        %710 = vrot.lane.b32.xlu0 %v709, 127
        %v711 = vpop.permute.xlu0 %710
        %v713 = vadd.f32 %v700, %v711
        %s714 = sld [smem:[#allocation5 + $0x23]]
        %v715 = vstv %s714
        %v716 = vmul.f32 %v715, %v631
        %v717 = vmul.f32 %v715, %v632
        %v720 = vrot.slane %v716, 2
        %v721 = vrot.slane %v717, 2
        %v722 = vsel %vm404, %v720, %v721
        %723 = vrot.lane.b32.xlu0 %v722, 126
        %v724 = vpop.permute.xlu0 %723
        %v726 = vadd.f32 %v713, %v724
        %s727 = sld [smem:[#allocation5 + $0x24]]
        %v728 = vstv %s727
        %v729 = vadd.f32 %v726, %v728
        %v730 = vxor.u32 %v729, 2147483648
        %v731 = vmul.f32 %v730, 1.442695
        %v732 = vpow.pop %v731
        %v733 = vadd.f32 %v732, 1.0
        %v734 = vrcp.pop %v733
        %v735 = vmul.f32 1.0, %v734
        %vm736 = vcmask 130048
        %737 = vst.msk [vmem:[%s319] sm:$0xff] %vm736, %v735
        %s738 = sand.u32 %s119, 1
        %s739 = scalar_lea.sflag [#allocation6], %s738
        %s740 = sand.u32 %s119, 1
        %s741 = smul.addr %s740, 8
        %s742 = scalar_lea.vmem [#allocation8], %s741
        // Predicated region
        $region113: #{tpu_custom_call.1} parent=99 // pred_check
          %p743 = pneg %p129
        $region114: #{tpu_custom_call.1} parent=99 // pred_check_branch
          %745 = sbr.rel (%p743) target = $region116
        $region115: #{tpu_custom_call.1} parent=99 // pred_region
          %s747 = ssub.s32 128, 128
          %748 = vsyncadd %s739, %s747
          %s749 = smul.addr %s22, 2
          %s750 = sadd.s32 %s23, %s749
          %s751 = smul.addr %s750, 128
          %s752 = scalar_lea.hbm %s3, %s751
          %s754 = sshll.u32 %s742, 4
          %s755 = int_to_ptr.vmem [resolvable:$true] %s754
          %757 = dma.vmem_to_hbm [thread:$0]  %s755, 128, %s752, %s739
        $region116: #{tpu_custom_call.1} parent=99 // pred_fallthru
          _
      $region100: #{tpu_custom_call.1} parent=5 // pred_fallthru
        _
      %p758 = scmp.le.s32.totalorder 2, %s13
      // Predicated region
      $region117: #{tpu_custom_call.1} parent=5 // pred_check
        %p759 = pneg %p758
      $region118: #{tpu_custom_call.1} parent=5 // pred_check_branch
        %761 = sbr.rel (%p759) target = $region120
      $region119: #{tpu_custom_call.1} parent=5 // pred_region
        %s762 = ssub.s32 %s13, 2
        // Predicated region
        $region121: #{tpu_custom_call.1} parent=119 // pred_check
          %p763 = pneg %p135
        $region122: #{tpu_custom_call.1} parent=119 // pred_check_branch
          %765 = sbr.rel (%p763) target = $region124
        $region123: #{tpu_custom_call.1} parent=119 // pred_region
          %s766 = sand.u32 %s120, 1
          %s767 = scalar_lea.sflag [#allocation6], %s766
          %s768 = sand.u32 %s120, 1
          %s769 = smul.addr %s768, 8
          %s770 = scalar_lea.vmem [#allocation8], %s769
          %771 = dma.done %s767, 128
        $region124: #{tpu_custom_call.1} parent=119 // pred_fallthru
          _
      $region120: #{tpu_custom_call.1} parent=5 // pred_fallthru
        _
    $region6: #{tpu_custom_call.1} parent=1 // loop_footer
      %s17 = sadd.s32 1, %s13
    $region7: #{tpu_custom_call.1} parent=1 // loop_footer_branch
      %12 = sbr.rel target = $region3
    $region8: #{tpu_custom_call.1} parent=1 // loop_exit
      _
    %772 = vsyncpa [#allocation6], 1
    %s773 = scalar_lea.sflag [#allocation6], 1
    %774 = vsyncpa %s773, 1
    %775 = vsyncpa [#allocation7], 1
    %s776 = scalar_lea.sflag [#allocation7], 1
    %777 = vsyncpa %s776, 1

</llo_original>
